<compile_context>
chip_gen: v5e
topology: v5e:2x2
jax: 0.10.0
libtpu: 0.0.40
codegen_flags: <defaults>
</compile_context>

<pallas_src>
import functools

import jax
import jax.numpy as jnp
from jax.experimental import pallas as pl
from jax.experimental.pallas import tpu as pltpu


def _snn_chunk_kernel(x_ref, spike_ref, v_ref, *, tc, v_threshold, v_reset):
    """Processes one (B, Tc, Ft) time-chunk of one feature tile.

    x_ref:     (B, Tc, Ft)  input block (native layout, Ft on lanes)
    spike_ref: (Tc, B, Ft)  output block (per-step store is a dense (B, Ft) tile)
    v_ref:     (B, Ft)      persistent membrane potential (VMEM scratch)
    Grid: (feature_tile, time_chunk); the time axis is innermost and sequential.
    """
    c = pl.program_id(1)

    @pl.when(c == 0)
    def _init():
        # torch.zeros((batch_size, feature_size)) at the start of the sequence.
        # Re-fires for every feature tile because the time axis is innermost.
        v_ref[...] = jnp.zeros_like(v_ref)

    thr = jnp.float32(v_threshold)
    v = v_ref[...]                                    # one VMEM load per chunk
    # Fully unrolled inner time loop (tc is small & static); v lives in vregs.
    for i in range(tc):
        v = v + x_ref[:, i, :]                        # neuronal_charge
        spike = (v >= thr).astype(jnp.float32)        # heaviside(v - v_threshold)
        if v_reset is None:
            v = v - spike * thr                       # soft reset
        else:
            v = (1.0 - spike) * v + spike * jnp.float32(v_reset)  # hard reset
        spike_ref[i] = spike
    v_ref[...] = v                                    # one VMEM store per chunk


def _pick_tiles(B, T, F):
    """Choose (time_chunk, feature_tile) sizes.

    Feature tile: lane-dense multiple of 128 when possible (capped at 256 so the
    double-buffered in+out blocks stay inside the default scoped-VMEM limit on
    every generation, including v7x's smaller VMEM), otherwise the full F.
    Time chunk: <= 64 steps (inner loop is unrolled); multiple of 8 or == T so the
    (B, Tc, Ft) block respects the (8, 128) tiling rule.
    """
    if F % 128 == 0:
        Ft = 256 if F % 256 == 0 else 128
    else:
        Ft = F
    if T <= 64:
        Tc = T
    else:
        Tc = 64
        for t in range(64, 7, -8):   # prefer a divisor of T (avoids padding)
            if T % t == 0:
                Tc = t
                break
    return Tc, Ft


def snn_multi_step(x, v_threshold=1.0, v_reset=None):
    """x: (B, T, F).  Returns (F, T*B) float32, matching SNNMultiStepMode.forward."""
    B, T, F = x.shape
    x = x.astype(jnp.float32)

    Tc, Ft = _pick_tiles(B, T, F)
    T_pad = -(-T // Tc) * Tc
    if T_pad != T:
        # Zero-padding trailing time steps is causal-safe; padded outputs are
        # sliced off below.
        x = jnp.pad(x, ((0, 0), (0, T_pad - T), (0, 0)))
    nf, nc = F // Ft, T_pad // Tc

    kernel = functools.partial(
        _snn_chunk_kernel, tc=Tc, v_threshold=float(v_threshold), v_reset=v_reset
    )

    spikes_tbf = pl.pallas_call(
        kernel,
        out_shape=jax.ShapeDtypeStruct((T_pad, B, F), jnp.float32),
        grid=(nf, nc),
        in_specs=[pl.BlockSpec((B, Tc, Ft), lambda fi, c: (0, c, fi))],
        out_specs=pl.BlockSpec((Tc, B, Ft), lambda fi, c: (c, 0, fi)),
        scratch_shapes=[pltpu.VMEM((B, Ft), jnp.float32)],  # membrane potential v
        compiler_params=pltpu.CompilerParams(
            # feature tiles are independent recurrences -> parallel (2 TCs on v7x);
            # time chunks carry v -> arbitrary (sequential).
            dimension_semantics=("parallel", "arbitrary"),
        ),
    )(x)

    # hidden_seq = cat([spike_t], dim=0) -> (T*B, F); .transpose(0, 1) -> (F, T*B).
    # The reshape is a free contiguous merge; only the .T is one XLA copy pass.
    # NOTE: spikes could be emitted as bf16 (values are exactly 0/1) to halve write
    # bandwidth if the consumer accepts bf16; kept f32 to match the module's dtype.
    return spikes_tbf[:T].reshape(T * B, F).T


def _snn_reference(x, v_threshold=1.0, v_reset=None):
    """Pure-JAX reference of the same recurrence (for a correctness check)."""
    B, T, F = x.shape
    x = x.astype(jnp.float32)
    v0 = jnp.zeros((B, F), jnp.float32)

    def step(v, x_t):
        v = v + x_t
        spike = (v - v_threshold >= 0.0).astype(jnp.float32)
        if v_reset is None:
            v = v - spike * v_threshold
        else:
            v = (1.0 - spike) * v + spike * v_reset
        return v, spike

    _, spikes = jax.lax.scan(step, v0, jnp.transpose(x, (1, 0, 2)))  # (T, B, F)
    return spikes.reshape(T * B, F).T


if __name__ == "__main__":
    # small shapes consistent with forward(): (batch, seq, feature)
    B, T, F = 2, 8, 32
    key = jax.random.PRNGKey(0)
    x = jax.random.normal(key, (B, T, F), dtype=jnp.float32)

    out = snn_multi_step(x, v_threshold=1.0, v_reset=None)
    out = jax.block_until_ready(out)

    ref = _snn_reference(x, v_threshold=1.0, v_reset=None)
    assert out.shape == (F, T * B), out.shape
    assert jnp.allclose(out, ref, atol=1e-6), "mismatch vs pure-JAX reference"

    print("KERNEL_OK")
</pallas_src>

<mosaic_0001>
module attributes {stable_mosaic.version = 11 : i64} {
  func.func @_snn_chunk_kernel(%arg0: i32, %arg1: i32, %arg2: memref<2x8x32xf32, #tpu.memory_space<vmem>>, %arg3: memref<8x2x32xf32, #tpu.memory_space<vmem>>, %arg4: memref<2x32xf32, #tpu.memory_space<vmem>>) attributes {dimension_semantics = [#tpu.dimension_semantics<parallel>, #tpu.dimension_semantics<arbitrary>], iteration_bounds = array<i64: 1, 1>, scalar_prefetch = 0 : i64, scratch_operands = 1 : i64, tpu.core_type = #tpu.core_type<tc>, window_params = [{transform_indices = @transform_0, window_bounds = array<i64: 2, 8, 32>}, {transform_indices = @transform_1, window_bounds = array<i64: 8, 2, 32>}]} {
    %c0_i32 = arith.constant 0 : i32
    %0 = arith.cmpi eq, %arg1, %c0_i32 : i32
    %1 = arith.extui %0 : i1 to i32
    %c0_i32_0 = arith.constant 0 : i32
    %2 = arith.cmpi ne, %1, %c0_i32_0 : i32
    scf.if %2 {
      %cst_60 = arith.constant 0.000000e+00 : f32
      %109 = vector.broadcast %cst_60 : f32 to vector<2x32xf32>
      %c0_61 = arith.constant 0 : index
      %c0_62 = arith.constant 0 : index
      %110 = vector.load %arg4[%c0_61, %c0_62] : memref<2x32xf32, #tpu.memory_space<vmem>>, vector<2x32xf32>
      tpu.vector_store %arg4[%c0_61, %c0_62], %109 {strides = array<i32>} : memref<2x32xf32, #tpu.memory_space<vmem>>, vector<2x32xf32>,
    } else {
    }
    %c0 = arith.constant 0 : index
    %c0_1 = arith.constant 0 : index
    %3 = vector.load %arg4[%c0, %c0_1] : memref<2x32xf32, #tpu.memory_space<vmem>>, vector<2x32xf32>
    %c0_2 = arith.constant 0 : index
    %c0_3 = arith.constant 0 : index
    %c0_4 = arith.constant 0 : index
    %4 = vector.load %arg2[%c0_2, %c0_3, %c0_4] : memref<2x8x32xf32, #tpu.memory_space<vmem>>, vector<2x1x32xf32>
    %5 = vector.shape_cast %4 : vector<2x1x32xf32> to vector<2x32xf32>
    %6 = arith.addf %3, %5 : vector<2x32xf32>
    %cst = arith.constant 1.000000e+00 : f32
    %7 = vector.broadcast %cst : f32 to vector<2x32xf32>
    %8 = arith.cmpf oge, %6, %7 : vector<2x32xf32>
    %9 = arith.extui %8 : vector<2x32xi1> to vector<2x32xi32>
    %10 = arith.sitofp %9 : vector<2x32xi32> to vector<2x32xf32>
    %cst_5 = arith.constant 1.000000e+00 : f32
    %11 = vector.broadcast %cst_5 : f32 to vector<2x32xf32>
    %12 = arith.mulf %10, %11 : vector<2x32xf32>
    %13 = arith.subf %6, %12 : vector<2x32xf32>
    %c0_6 = arith.constant 0 : index
    %c0_7 = arith.constant 0 : index
    %c0_8 = arith.constant 0 : index
    %14 = vector.load %arg3[%c0_6, %c0_7, %c0_8] : memref<8x2x32xf32, #tpu.memory_space<vmem>>, vector<1x2x32xf32>
    %15 = vector.shape_cast %14 : vector<1x2x32xf32> to vector<2x32xf32>
    %16 = vector.shape_cast %10 : vector<2x32xf32> to vector<1x2x32xf32>
    tpu.vector_store %arg3[%c0_6, %c0_7, %c0_8], %16 {strides = array<i32>} : memref<8x2x32xf32, #tpu.memory_space<vmem>>, vector<1x2x32xf32>,
    %c0_9 = arith.constant 0 : index
    %c1 = arith.constant 1 : index
    %c0_10 = arith.constant 0 : index
    %17 = vector.load %arg2[%c0_9, %c1, %c0_10] : memref<2x8x32xf32, #tpu.memory_space<vmem>>, vector<2x1x32xf32>
    %18 = vector.shape_cast %17 : vector<2x1x32xf32> to vector<2x32xf32>
    %19 = arith.addf %13, %18 : vector<2x32xf32>
    %cst_11 = arith.constant 1.000000e+00 : f32
    %20 = vector.broadcast %cst_11 : f32 to vector<2x32xf32>
    %21 = arith.cmpf oge, %19, %20 : vector<2x32xf32>
    %22 = arith.extui %21 : vector<2x32xi1> to vector<2x32xi32>
    %23 = arith.sitofp %22 : vector<2x32xi32> to vector<2x32xf32>
    %cst_12 = arith.constant 1.000000e+00 : f32
    %24 = vector.broadcast %cst_12 : f32 to vector<2x32xf32>
    %25 = arith.mulf %23, %24 : vector<2x32xf32>
    %26 = arith.subf %19, %25 : vector<2x32xf32>
    %c1_13 = arith.constant 1 : index
    %c0_14 = arith.constant 0 : index
    %c0_15 = arith.constant 0 : index
    %27 = vector.load %arg3[%c1_13, %c0_14, %c0_15] : memref<8x2x32xf32, #tpu.memory_space<vmem>>, vector<1x2x32xf32>
    %28 = vector.shape_cast %27 : vector<1x2x32xf32> to vector<2x32xf32>
    %29 = vector.shape_cast %23 : vector<2x32xf32> to vector<1x2x32xf32>
    tpu.vector_store %arg3[%c1_13, %c0_14, %c0_15], %29 {strides = array<i32>} : memref<8x2x32xf32, #tpu.memory_space<vmem>>, vector<1x2x32xf32>,
    %c0_16 = arith.constant 0 : index
    %c2 = arith.constant 2 : index
    %c0_17 = arith.constant 0 : index
    %30 = vector.load %arg2[%c0_16, %c2, %c0_17] : memref<2x8x32xf32, #tpu.memory_space<vmem>>, vector<2x1x32xf32>
    %31 = vector.shape_cast %30 : vector<2x1x32xf32> to vector<2x32xf32>
    %32 = arith.addf %26, %31 : vector<2x32xf32>
    %cst_18 = arith.constant 1.000000e+00 : f32
    %33 = vector.broadcast %cst_18 : f32 to vector<2x32xf32>
    %34 = arith.cmpf oge, %32, %33 : vector<2x32xf32>
    %35 = arith.extui %34 : vector<2x32xi1> to vector<2x32xi32>
    %36 = arith.sitofp %35 : vector<2x32xi32> to vector<2x32xf32>
    %cst_19 = arith.constant 1.000000e+00 : f32
    %37 = vector.broadcast %cst_19 : f32 to vector<2x32xf32>
    %38 = arith.mulf %36, %37 : vector<2x32xf32>
    %39 = arith.subf %32, %38 : vector<2x32xf32>
    %c2_20 = arith.constant 2 : index
    %c0_21 = arith.constant 0 : index
    %c0_22 = arith.constant 0 : index
    %40 = vector.load %arg3[%c2_20, %c0_21, %c0_22] : memref<8x2x32xf32, #tpu.memory_space<vmem>>, vector<1x2x32xf32>
    %41 = vector.shape_cast %40 : vector<1x2x32xf32> to vector<2x32xf32>
    %42 = vector.shape_cast %36 : vector<2x32xf32> to vector<1x2x32xf32>
    tpu.vector_store %arg3[%c2_20, %c0_21, %c0_22], %42 {strides = array<i32>} : memref<8x2x32xf32, #tpu.memory_space<vmem>>, vector<1x2x32xf32>,
    %c0_23 = arith.constant 0 : index
    %c3 = arith.constant 3 : index
    %c0_24 = arith.constant 0 : index
    %43 = vector.load %arg2[%c0_23, %c3, %c0_24] : memref<2x8x32xf32, #tpu.memory_space<vmem>>, vector<2x1x32xf32>
    %44 = vector.shape_cast %43 : vector<2x1x32xf32> to vector<2x32xf32>
    %45 = arith.addf %39, %44 : vector<2x32xf32>
    %cst_25 = arith.constant 1.000000e+00 : f32
    %46 = vector.broadcast %cst_25 : f32 to vector<2x32xf32>
    %47 = arith.cmpf oge, %45, %46 : vector<2x32xf32>
    %48 = arith.extui %47 : vector<2x32xi1> to vector<2x32xi32>
    %49 = arith.sitofp %48 : vector<2x32xi32> to vector<2x32xf32>
    %cst_26 = arith.constant 1.000000e+00 : f32
    %50 = vector.broadcast %cst_26 : f32 to vector<2x32xf32>
    %51 = arith.mulf %49, %50 : vector<2x32xf32>
    %52 = arith.subf %45, %51 : vector<2x32xf32>
    %c3_27 = arith.constant 3 : index
    %c0_28 = arith.constant 0 : index
    %c0_29 = arith.constant 0 : index
    %53 = vector.load %arg3[%c3_27, %c0_28, %c0_29] : memref<8x2x32xf32, #tpu.memory_space<vmem>>, vector<1x2x32xf32>
    %54 = vector.shape_cast %53 : vector<1x2x32xf32> to vector<2x32xf32>
    %55 = vector.shape_cast %49 : vector<2x32xf32> to vector<1x2x32xf32>
    tpu.vector_store %arg3[%c3_27, %c0_28, %c0_29], %55 {strides = array<i32>} : memref<8x2x32xf32, #tpu.memory_space<vmem>>, vector<1x2x32xf32>,
    %c0_30 = arith.constant 0 : index
    %c4 = arith.constant 4 : index
    %c0_31 = arith.constant 0 : index
    %56 = vector.load %arg2[%c0_30, %c4, %c0_31] : memref<2x8x32xf32, #tpu.memory_space<vmem>>, vector<2x1x32xf32>
    %57 = vector.shape_cast %56 : vector<2x1x32xf32> to vector<2x32xf32>
    %58 = arith.addf %52, %57 : vector<2x32xf32>
    %cst_32 = arith.constant 1.000000e+00 : f32
    %59 = vector.broadcast %cst_32 : f32 to vector<2x32xf32>
    %60 = arith.cmpf oge, %58, %59 : vector<2x32xf32>
    %61 = arith.extui %60 : vector<2x32xi1> to vector<2x32xi32>
    %62 = arith.sitofp %61 : vector<2x32xi32> to vector<2x32xf32>
    %cst_33 = arith.constant 1.000000e+00 : f32
    %63 = vector.broadcast %cst_33 : f32 to vector<2x32xf32>
    %64 = arith.mulf %62, %63 : vector<2x32xf32>
    %65 = arith.subf %58, %64 : vector<2x32xf32>
    %c4_34 = arith.constant 4 : index
    %c0_35 = arith.constant 0 : index
    %c0_36 = arith.constant 0 : index
    %66 = vector.load %arg3[%c4_34, %c0_35, %c0_36] : memref<8x2x32xf32, #tpu.memory_space<vmem>>, vector<1x2x32xf32>
    %67 = vector.shape_cast %66 : vector<1x2x32xf32> to vector<2x32xf32>
    %68 = vector.shape_cast %62 : vector<2x32xf32> to vector<1x2x32xf32>
    tpu.vector_store %arg3[%c4_34, %c0_35, %c0_36], %68 {strides = array<i32>} : memref<8x2x32xf32, #tpu.memory_space<vmem>>, vector<1x2x32xf32>,
    %c0_37 = arith.constant 0 : index
    %c5 = arith.constant 5 : index
    %c0_38 = arith.constant 0 : index
    %69 = vector.load %arg2[%c0_37, %c5, %c0_38] : memref<2x8x32xf32, #tpu.memory_space<vmem>>, vector<2x1x32xf32>
    %70 = vector.shape_cast %69 : vector<2x1x32xf32> to vector<2x32xf32>
    %71 = arith.addf %65, %70 : vector<2x32xf32>
    %cst_39 = arith.constant 1.000000e+00 : f32
    %72 = vector.broadcast %cst_39 : f32 to vector<2x32xf32>
    %73 = arith.cmpf oge, %71, %72 : vector<2x32xf32>
    %74 = arith.extui %73 : vector<2x32xi1> to vector<2x32xi32>
    %75 = arith.sitofp %74 : vector<2x32xi32> to vector<2x32xf32>
    %cst_40 = arith.constant 1.000000e+00 : f32
    %76 = vector.broadcast %cst_40 : f32 to vector<2x32xf32>
    %77 = arith.mulf %75, %76 : vector<2x32xf32>
    %78 = arith.subf %71, %77 : vector<2x32xf32>
    %c5_41 = arith.constant 5 : index
    %c0_42 = arith.constant 0 : index
    %c0_43 = arith.constant 0 : index
    %79 = vector.load %arg3[%c5_41, %c0_42, %c0_43] : memref<8x2x32xf32, #tpu.memory_space<vmem>>, vector<1x2x32xf32>
    %80 = vector.shape_cast %79 : vector<1x2x32xf32> to vector<2x32xf32>
    %81 = vector.shape_cast %75 : vector<2x32xf32> to vector<1x2x32xf32>
    tpu.vector_store %arg3[%c5_41, %c0_42, %c0_43], %81 {strides = array<i32>} : memref<8x2x32xf32, #tpu.memory_space<vmem>>, vector<1x2x32xf32>,
    %c0_44 = arith.constant 0 : index
    %c6 = arith.constant 6 : index
    %c0_45 = arith.constant 0 : index
    %82 = vector.load %arg2[%c0_44, %c6, %c0_45] : memref<2x8x32xf32, #tpu.memory_space<vmem>>, vector<2x1x32xf32>
    %83 = vector.shape_cast %82 : vector<2x1x32xf32> to vector<2x32xf32>
    %84 = arith.addf %78, %83 : vector<2x32xf32>
    %cst_46 = arith.constant 1.000000e+00 : f32
    %85 = vector.broadcast %cst_46 : f32 to vector<2x32xf32>
    %86 = arith.cmpf oge, %84, %85 : vector<2x32xf32>
    %87 = arith.extui %86 : vector<2x32xi1> to vector<2x32xi32>
    %88 = arith.sitofp %87 : vector<2x32xi32> to vector<2x32xf32>
    %cst_47 = arith.constant 1.000000e+00 : f32
    %89 = vector.broadcast %cst_47 : f32 to vector<2x32xf32>
    %90 = arith.mulf %88, %89 : vector<2x32xf32>
    %91 = arith.subf %84, %90 : vector<2x32xf32>
    %c6_48 = arith.constant 6 : index
    %c0_49 = arith.constant 0 : index
    %c0_50 = arith.constant 0 : index
    %92 = vector.load %arg3[%c6_48, %c0_49, %c0_50] : memref<8x2x32xf32, #tpu.memory_space<vmem>>, vector<1x2x32xf32>
    %93 = vector.shape_cast %92 : vector<1x2x32xf32> to vector<2x32xf32>
    %94 = vector.shape_cast %88 : vector<2x32xf32> to vector<1x2x32xf32>
    tpu.vector_store %arg3[%c6_48, %c0_49, %c0_50], %94 {strides = array<i32>} : memref<8x2x32xf32, #tpu.memory_space<vmem>>, vector<1x2x32xf32>,
    %c0_51 = arith.constant 0 : index
    %c7 = arith.constant 7 : index
    %c0_52 = arith.constant 0 : index
    %95 = vector.load %arg2[%c0_51, %c7, %c0_52] : memref<2x8x32xf32, #tpu.memory_space<vmem>>, vector<2x1x32xf32>
    %96 = vector.shape_cast %95 : vector<2x1x32xf32> to vector<2x32xf32>
    %97 = arith.addf %91, %96 : vector<2x32xf32>
    %cst_53 = arith.constant 1.000000e+00 : f32
    %98 = vector.broadcast %cst_53 : f32 to vector<2x32xf32>
    %99 = arith.cmpf oge, %97, %98 : vector<2x32xf32>
    %100 = arith.extui %99 : vector<2x32xi1> to vector<2x32xi32>
    %101 = arith.sitofp %100 : vector<2x32xi32> to vector<2x32xf32>
    %cst_54 = arith.constant 1.000000e+00 : f32
    %102 = vector.broadcast %cst_54 : f32 to vector<2x32xf32>
    %103 = arith.mulf %101, %102 : vector<2x32xf32>
    %104 = arith.subf %97, %103 : vector<2x32xf32>
    %c7_55 = arith.constant 7 : index
    %c0_56 = arith.constant 0 : index
    %c0_57 = arith.constant 0 : index
    %105 = vector.load %arg3[%c7_55, %c0_56, %c0_57] : memref<8x2x32xf32, #tpu.memory_space<vmem>>, vector<1x2x32xf32>
    %106 = vector.shape_cast %105 : vector<1x2x32xf32> to vector<2x32xf32>
    %107 = vector.shape_cast %101 : vector<2x32xf32> to vector<1x2x32xf32>
    tpu.vector_store %arg3[%c7_55, %c0_56, %c0_57], %107 {strides = array<i32>} : memref<8x2x32xf32, #tpu.memory_space<vmem>>, vector<1x2x32xf32>,
    %c0_58 = arith.constant 0 : index
    %c0_59 = arith.constant 0 : index
    %108 = vector.load %arg4[%c0_58, %c0_59] : memref<2x32xf32, #tpu.memory_space<vmem>>, vector<2x32xf32>
    tpu.vector_store %arg4[%c0_58, %c0_59], %104 {strides = array<i32>} : memref<2x32xf32, #tpu.memory_space<vmem>>, vector<2x32xf32>,
    return
  }
  func.func @transform_0(%arg0: i32, %arg1: i32) -> (i32, i32, i32) {
    %c0_i32 = arith.constant 0 : i32
    %c0_i32_0 = arith.constant 0 : i32
    return %c0_i32, %arg1, %arg0 : i32, i32, i32
  }
  func.func @transform_1(%arg0: i32, %arg1: i32) -> (i32, i32, i32) {
    %c0_i32 = arith.constant 0 : i32
    %c0_i32_0 = arith.constant 0 : i32
    return %arg1, %c0_i32, %arg0 : i32, i32, i32
  }
}

</mosaic_0001>

<llo_original>
// kernel: tpu_custom_call.1
$region0: #{tpu_custom_call.1}
  #allocation0 [shape = 'u32[]', space=smem, size = 0x4, offset = 0x4, fixed_abs, tag = 'smem constant byte address 0x4 - core index']
  #allocation1 [shape = 'u32[72,128]{1,0:T(1,128)}', space=vmem, size = 0x9000, scoped, tag = 'internal scratch']
  #allocation2 [shape = 'f32[2,32]{1,0:T(2,128)}', space=vmem, size = 0x400, scoped, tag = 'scratch operand']
  %s0 = inlined_call_operand.hbm [shape: f32[2,8,32], index: 0, kind: input, shape index: {}]
  %s1 = inlined_call_operand.hbm [shape: f32[8,2,32], index: 1, kind: output, shape index: {}]
  %s2 = sld [smem:[#allocation0]]
  $region22: #{tpu_custom_call.1} parent=0
    _
  %s4 = ssub.s32 1, %s2
  %s5 = scalar_select 0, %s4, %s2
  $region1: #{tpu_custom_call.1} parent=0
    #allocation3 [shape = 'u8[8192]{0}', space=vmem, size = 0x2000, scoped, tag = 'input window, operand 0, single buffered']
    #allocation4 [shape = 's32[1]{0}', space=sflag, size = 0x4, scoped, tag = 'scoped memory for tpu_custom_call.1']
    #allocation5 [shape = 's32[1]{0}', space=sflag, size = 0x4, scoped, tag = 'scoped memory for tpu_custom_call.1']
    #allocation6 [shape = 'u8[8192]{0}', space=vmem, size = 0x2000, scoped, tag = 'output window, operand 0, single buffered']
    %6 = vsyncpa [#allocation4], 0
    %7 = vsyncpa [#allocation5], 0
    // Predicated region
    $region2: #{tpu_custom_call.1} parent=1 // pred_check
      _
    $region3: #{tpu_custom_call.1} parent=1 // pred_check_branch
      %9 = sbr.rel (0) target = $region5
    $region4: #{tpu_custom_call.1} parent=1 // pred_region
      %11 = vsyncadd [#allocation4], 0
      %s12 = sshll.u32 %s0, 4
      %s13 = int_to_ptr.hbm [resolvable:$true] %s12
      %s14 = sshll.u32 [#allocation3], 4
      %s15 = int_to_ptr.vmem [resolvable:$true] %s14
      %20 = dma.hbm_to_vmem [thread:$0]  %s13, 256, %s15, [#allocation4], 128, 128, 8
    $region5: #{tpu_custom_call.1} parent=1 // pred_fallthru
      _
    // Predicated region
    $region6: #{tpu_custom_call.1} parent=1 // pred_check
      _
    $region7: #{tpu_custom_call.1} parent=1 // pred_check_branch
      %22 = sbr.rel (0) target = $region9
    $region8: #{tpu_custom_call.1} parent=1 // pred_region
      %24 = dma.done [#allocation4], 256
    $region9: #{tpu_custom_call.1} parent=1 // pred_fallthru
      _
    %p25 = scmp.eq.s32.totalorder 0, 0
    // Predicated region
    $region10: #{tpu_custom_call.1} parent=1 // pred_check
      %p26 = pneg %p25
    $region11: #{tpu_custom_call.1} parent=1 // pred_check_branch
      %28 = sbr.rel (%p26) target = $region13
    $region12: #{tpu_custom_call.1} parent=1 // pred_region
      %vm29 = vcmask 254976
      %30 = vst.msk [vmem:[#allocation2] sm:$0x3] %vm29, 0.0
    $region13: #{tpu_custom_call.1} parent=1 // pred_fallthru
      _
    %v31 = vld [vmem:[#allocation2] sm:$0x3]
    %v32 = vld [vmem:[#allocation3] sm:$0x1]
    %v33 = vld [vmem:[#allocation3 + $0x8] sm:$0x1]
    %v36 = vrot.slane %v33, 7
    %vm37 = vcmask 1041409
    %v38 = vsel %vm37, %v36, %v32
    %v40 = vadd.f32 %v31, %v38
    %vm41 = vcmp.ge.f32.partialorder %v40, 1.0
    %v42 = vsel %vm41, 1, 0
    %v43 = vcvt.s32.f32 %v42
    %v44 = vsub.f32 %v40, %v43
    %vm45 = vcmask 254976
    %46 = vst.msk [vmem:[#allocation6] sm:$0x3] %vm45, %v43
    %v47 = vld [vmem:[#allocation3 + $0x1] sm:$0x1]
    %v48 = vld [vmem:[#allocation3 + $0x9] sm:$0x1]
    %v51 = vrot.slane %v48, 7
    %v52 = vsel %vm37, %v51, %v47
    %v54 = vadd.f32 %v44, %v52
    %vm55 = vcmp.ge.f32.partialorder %v54, 1.0
    %v56 = vsel %vm55, 1, 0
    %v57 = vcvt.s32.f32 %v56
    %v58 = vsub.f32 %v54, %v57
    %s59 = scalar_lea.vmem [#allocation6], 2
    %60 = vst.msk [vmem:[%s59] sm:$0x3] %vm45, %v57
    %v61 = vld [vmem:[#allocation3 + $0x2] sm:$0x1]
    %v62 = vld [vmem:[#allocation3 + $0xa] sm:$0x1]
    %v65 = vrot.slane %v62, 7
    %v66 = vsel %vm37, %v65, %v61
    %v68 = vadd.f32 %v58, %v66
    %vm69 = vcmp.ge.f32.partialorder %v68, 1.0
    %v70 = vsel %vm69, 1, 0
    %v71 = vcvt.s32.f32 %v70
    %v72 = vsub.f32 %v68, %v71
    %s73 = scalar_lea.vmem [#allocation6], 4
    %74 = vst.msk [vmem:[%s73] sm:$0x3] %vm45, %v71
    %v75 = vld [vmem:[#allocation3 + $0x3] sm:$0x1]
    %v76 = vld [vmem:[#allocation3 + $0xb] sm:$0x1]
    %v79 = vrot.slane %v76, 7
    %v80 = vsel %vm37, %v79, %v75
    %v82 = vadd.f32 %v72, %v80
    %vm83 = vcmp.ge.f32.partialorder %v82, 1.0
    %v84 = vsel %vm83, 1, 0
    %v85 = vcvt.s32.f32 %v84
    %v86 = vsub.f32 %v82, %v85
    %s87 = scalar_lea.vmem [#allocation6], 6
    %88 = vst.msk [vmem:[%s87] sm:$0x3] %vm45, %v85
    %v89 = vld [vmem:[#allocation3 + $0x4] sm:$0x1]
    %v90 = vld [vmem:[#allocation3 + $0xc] sm:$0x1]
    %v93 = vrot.slane %v90, 7
    %v94 = vsel %vm37, %v93, %v89
    %v96 = vadd.f32 %v86, %v94
    %vm97 = vcmp.ge.f32.partialorder %v96, 1.0
    %v98 = vsel %vm97, 1, 0
    %v99 = vcvt.s32.f32 %v98
    %v100 = vsub.f32 %v96, %v99
    %s101 = scalar_lea.vmem [#allocation6], 8
    %102 = vst.msk [vmem:[%s101] sm:$0x3] %vm45, %v99
    %v103 = vld [vmem:[#allocation3 + $0x5] sm:$0x1]
    %v104 = vld [vmem:[#allocation3 + $0xd] sm:$0x1]
    %v107 = vrot.slane %v104, 7
    %v108 = vsel %vm37, %v107, %v103
    %v110 = vadd.f32 %v100, %v108
    %vm111 = vcmp.ge.f32.partialorder %v110, 1.0
    %v112 = vsel %vm111, 1, 0
    %v113 = vcvt.s32.f32 %v112
    %v114 = vsub.f32 %v110, %v113
    %s115 = scalar_lea.vmem [#allocation6], 10
    %116 = vst.msk [vmem:[%s115] sm:$0x3] %vm45, %v113
    %v117 = vld [vmem:[#allocation3 + $0x6] sm:$0x1]
    %v118 = vld [vmem:[#allocation3 + $0xe] sm:$0x1]
    %v121 = vrot.slane %v118, 7
    %v122 = vsel %vm37, %v121, %v117
    %v124 = vadd.f32 %v114, %v122
    %vm125 = vcmp.ge.f32.partialorder %v124, 1.0
    %v126 = vsel %vm125, 1, 0
    %v127 = vcvt.s32.f32 %v126
    %v128 = vsub.f32 %v124, %v127
    %s129 = scalar_lea.vmem [#allocation6], 12
    %130 = vst.msk [vmem:[%s129] sm:$0x3] %vm45, %v127
    %v131 = vld [vmem:[#allocation3 + $0x7] sm:$0x1]
    %v132 = vld [vmem:[#allocation3 + $0xf] sm:$0x1]
    %v135 = vrot.slane %v132, 7
    %v136 = vsel %vm37, %v135, %v131
    %v138 = vadd.f32 %v128, %v136
    %vm139 = vcmp.ge.f32.partialorder %v138, 1.0
    %v140 = vsel %vm139, 1, 0
    %v141 = vcvt.s32.f32 %v140
    %v142 = vsub.f32 %v138, %v141
    %s143 = scalar_lea.vmem [#allocation6], 14
    %144 = vst.msk [vmem:[%s143] sm:$0x3] %vm45, %v141
    %145 = vst.msk [vmem:[#allocation2] sm:$0x3] %vm45, %v142
    // Predicated region
    $region14: #{tpu_custom_call.1} parent=1 // pred_check
      _
    $region15: #{tpu_custom_call.1} parent=1 // pred_check_branch
      %147 = sbr.rel (0) target = $region17
    $region16: #{tpu_custom_call.1} parent=1 // pred_region
      %149 = vsyncadd [#allocation5], 0
      %s150 = sshll.u32 [#allocation6], 4
      %s151 = int_to_ptr.vmem [resolvable:$true] %s150
      %s152 = sshll.u32 %s1, 4
      %s153 = int_to_ptr.hbm [resolvable:$true] %s152
      %158 = dma.vmem_to_hbm [thread:$0]  %s151, 256, %s153, [#allocation5], 32, 32, 2
    $region17: #{tpu_custom_call.1} parent=1 // pred_fallthru
      _
    // Predicated region
    $region18: #{tpu_custom_call.1} parent=1 // pred_check
      _
    $region19: #{tpu_custom_call.1} parent=1 // pred_check_branch
      %160 = sbr.rel (0) target = $region21
    $region20: #{tpu_custom_call.1} parent=1 // pred_region
      %162 = dma.done [#allocation5], 256
    $region21: #{tpu_custom_call.1} parent=1 // pred_fallthru
      _
    %163 = vsyncpa [#allocation4], 1
    %164 = vsyncpa [#allocation5], 1

</llo_original>
